<compile_context>
chip_gen: v5e
topology: v5e:2x2
jax: 0.10.0
libtpu: 0.0.40
codegen_flags: <defaults>
</compile_context>

<pallas_src>
import functools

import jax
import jax.numpy as jnp
from jax.experimental import pallas as pl
from jax.experimental.pallas import tpu as pltpu


# --------------------------------------------------------------------------- #
# Kernels
# --------------------------------------------------------------------------- #
def _rmsnorm_kernel(x_ref, w_ref, o_ref, *, eps):
    """Standard path: one logical row per physical row, d_model on lanes."""
    x = x_ref[...].astype(jnp.float32)
    mean_sq = jnp.mean(x * x, axis=-1, keepdims=True)      # (T, 1), f32 accumulation
    norm = jax.lax.rsqrt(mean_sq + eps)                    # EUP rsqrt (free slot)
    w = w_ref[...].astype(jnp.float32)                     # (1, D), VMEM-resident
    o_ref[...] = (x * (norm * w)).astype(o_ref.dtype)


def _rmsnorm_folded_kernel(x_ref, w_ref, seg_ref, o_ref, *, eps):
    """Lane-dense path for d_model < 128.

    Each physical row packs G = width // d_model logical rows along the lane
    dim.  seg_ref is a (width, width) block-diagonal matrix whose same-segment
    entries are 1/d_model, so (x*x) @ seg yields, at every lane, that logical
    row's mean of squares already broadcast across its lanes (segmented
    reduce+broadcast on the MXU; no cross-lane VPU/XLU ops, no masked stores).
    """
    x = x_ref[...].astype(jnp.float32)
    mean_sq = jnp.dot(x * x, seg_ref[...], preferred_element_type=jnp.float32)
    norm = jax.lax.rsqrt(mean_sq + eps)
    w = w_ref[...].astype(jnp.float32)                     # (1, width) = weight tiled G times
    o_ref[...] = (x * (norm * w)).astype(o_ref.dtype)


# --------------------------------------------------------------------------- #
# Tiling policy
# --------------------------------------------------------------------------- #
def _round_up(n, m):
    return ((n + m - 1) // m) * m


def _sublane_align(dtype):
    """Packed-sublane multiple: 8 for 4-byte, 16 for bf16/fp16, 32 for int8/fp8."""
    return max(8, 32 // jnp.dtype(dtype).itemsize)


def _vmem_params():
    """Generation-aware (row-tile VMEM budget, vmem_limit_bytes)."""
    budget, limit = 32 << 20, 48 << 20               # safe on v7x (64 MiB VMEM/TC)
    try:
        cap = getattr(pltpu.get_tpu_info(), "vmem_capacity_bytes", None)
        if cap is not None and cap >= (100 << 20):   # v5e / v6e: 128 MiB VMEM/TC
            budget, limit = 64 << 20, 100 << 20
    except Exception:                                # unknown runtime: stay conservative
        pass
    return budget, limit


def _pick_row_tile(rows, width, itemsize, vmem_budget_bytes, sub):
    """Biggest row tile fitting the VMEM budget (mem-bound op => big tiles)."""
    # Per step & per row: 2x double-buffered input + 2x double-buffered output
    # (4*itemsize) plus a few block-sized f32 temporaries (~16 B/elem headroom).
    bytes_per_row = width * (4 * itemsize + 16)
    tile = vmem_budget_bytes // max(bytes_per_row, 1)
    tile = max(sub, (tile // sub) * sub)             # VMEM budget alone drives size
    tile = min(tile, _round_up(rows, sub))
    # Keep >= 4 grid steps (>= 2 per v7x TensorCore) when rows permit, so the
    # "parallel" axis both shards across TCs and still pipelines within each TC.
    min_steps = 4
    if rows >= min_steps * sub:
        tile = min(tile, max(sub, ((rows // min_steps) // sub) * sub))
    if tile > rows:                                  # tiny tensor: one full-extent block
        tile = rows
    return tile


# --------------------------------------------------------------------------- #
# Wrapper
# --------------------------------------------------------------------------- #
def rmsnorm(x, weight, eps=1e-8, row_tile=None,
            vmem_budget_bytes=None, vmem_limit_bytes=None):
    """x: (..., d_model); weight: (d_model,).  Matches torch RMSNorm.forward."""
    orig_shape = x.shape
    d_model = orig_shape[-1]
    x2d = x.reshape(-1, d_model)
    rows = x2d.shape[0]
    itemsize = x2d.dtype.itemsize
    sub = _sublane_align(x2d.dtype)

    default_budget, default_limit = _vmem_params()
    if vmem_budget_bytes is None:
        vmem_budget_bytes = default_budget
    if vmem_limit_bytes is None:
        vmem_limit_bytes = default_limit

    # Lane-density fold for narrow features: pack G = 128 // d_model logical
    # rows into the 128-lane dim so every load/store is a full-width vector op.
    fold = 1
    if d_model < 128 and 128 % d_model == 0 and rows % (128 // d_model) == 0:
        fold = 128 // d_model
    # TODO(synk): d_model < 128 that does not divide 128 (or rows not a multiple
    # of the fold) still takes the lane-partial path; padding d_model to 128 in
    # the wrapper would recover lane density there too.

    width = fold * d_model
    rows_eff = rows // fold

    if row_tile is None:
        row_tile = _pick_row_tile(rows_eff, width, itemsize, vmem_budget_bytes, sub)
    grid = (pl.cdiv(rows_eff, row_tile),)

    # Advisory hint: clearly memory-bound custom call.
    flops = 4 * rows * d_model + (2 * rows_eff * width * width if fold > 1 else 0)
    cost = pl.CostEstimate(
        flops=flops,
        transcendentals=rows,
        bytes_accessed=2 * rows * d_model * itemsize + width * weight.dtype.itemsize,
    )
    compiler_params = pltpu.CompilerParams(
        dimension_semantics=("parallel",),
        vmem_limit_bytes=vmem_limit_bytes,
    )
    # TODO(synk): for very small blocks (narrow d_model, many grid steps) sweep
    # pipeline_mode=pl.Buffered(3) on the x BlockSpec (few-% win on v7x).

    if fold > 1:
        x_in = x2d.reshape(rows_eff, width)
        w_in = jnp.tile(weight.reshape(1, d_model), (1, fold))
        lane_seg = jnp.arange(width) // d_model
        seg = jnp.where(lane_seg[:, None] == lane_seg[None, :],
                        jnp.float32(1.0 / d_model), jnp.float32(0.0))
        out = pl.pallas_call(
            functools.partial(_rmsnorm_folded_kernel, eps=eps),
            out_shape=jax.ShapeDtypeStruct((rows_eff, width), x.dtype),
            grid=grid,
            in_specs=[
                pl.BlockSpec((row_tile, width), lambda i: (i, 0)),
                pl.BlockSpec((1, width), lambda i: (0, 0)),      # resident weight
                pl.BlockSpec((width, width), lambda i: (0, 0)),  # resident seg matrix
            ],
            out_specs=pl.BlockSpec((row_tile, width), lambda i: (i, 0)),
            compiler_params=compiler_params,
            cost_estimate=cost,
        )(x_in, w_in, seg)
    else:
        w_in = weight.reshape(1, d_model)
        out = pl.pallas_call(
            functools.partial(_rmsnorm_kernel, eps=eps),
            out_shape=jax.ShapeDtypeStruct((rows_eff, width), x.dtype),
            grid=grid,
            in_specs=[
                pl.BlockSpec((row_tile, width), lambda i: (i, 0)),
                pl.BlockSpec((1, width), lambda i: (0, 0)),      # resident weight
            ],
            out_specs=pl.BlockSpec((row_tile, width), lambda i: (i, 0)),
            compiler_params=compiler_params,
            cost_estimate=cost,
        )(x2d, w_in)

    return out.reshape(orig_shape)


def rmsnorm_ref(x, weight, eps=1e-8):
    x32 = x.astype(jnp.float32)
    norm = jax.lax.rsqrt(jnp.mean(x32 * x32, axis=-1, keepdims=True) + eps)
    return (x32 * norm * weight.astype(jnp.float32)).astype(x.dtype)


if __name__ == "__main__":
    key = jax.random.PRNGKey(0)
    kx, kw = jax.random.split(key)

    # Shapes implied by the module: (batch, seq, d_model) with d_model=32.
    batch, seq, d_model = 2, 8, 32
    x = jax.random.normal(kx, (batch, seq, d_model), dtype=jnp.float32)
    weight = jnp.ones((d_model,), dtype=jnp.float32)   # nn.Parameter(torch.ones(d_model))

    out = rmsnorm(x, weight, eps=1e-8)                 # lane-dense folded path (d_model < 128)
    jax.block_until_ready(out)
    assert out.shape == x.shape
    assert jnp.allclose(out, rmsnorm_ref(x, weight, eps=1e-8), atol=1e-5, rtol=1e-5)

    # Also exercise the standard (d_model >= 128) path with a non-trivial weight.
    x2 = jax.random.normal(kx, (batch, seq, 256), dtype=jnp.float32)
    w2 = 1.0 + 0.1 * jax.random.normal(kw, (256,), dtype=jnp.float32)
    out2 = rmsnorm(x2, w2, eps=1e-8)
    jax.block_until_ready(out2)
    assert jnp.allclose(out2, rmsnorm_ref(x2, w2, eps=1e-8), atol=1e-5, rtol=1e-5)

    print("KERNEL_OK")
</pallas_src>

<mosaic_0001>
module attributes {stable_mosaic.version = 11 : i64} {
  func.func @_rmsnorm_folded_kernel(%arg0: i32, %arg1: memref<4x128xf32, #tpu.memory_space<vmem>>, %arg2: memref<1x128xf32, #tpu.memory_space<vmem>>, %arg3: memref<128x128xf32, #tpu.memory_space<vmem>>, %arg4: memref<4x128xf32, #tpu.memory_space<vmem>>) attributes {dimension_semantics = [#tpu.dimension_semantics<parallel>], iteration_bounds = array<i64: 1>, scalar_prefetch = 0 : i64, scratch_operands = 0 : i64, tpu.core_type = #tpu.core_type<tc>, window_params = [{transform_indices = @transform_0, window_bounds = array<i64: 4, 128>}, {pipeline_mode = #tpu.pipeline_mode<synchronous>, transform_indices = @transform_1, window_bounds = array<i64: 1, 128>}, {pipeline_mode = #tpu.pipeline_mode<synchronous>, transform_indices = @transform_2, window_bounds = array<i64: 128, 128>}, {transform_indices = @transform_3, window_bounds = array<i64: 4, 128>}]} {
    %c0 = arith.constant 0 : index
    %c0_0 = arith.constant 0 : index
    %0 = vector.load %arg1[%c0, %c0_0] : memref<4x128xf32, #tpu.memory_space<vmem>>, vector<4x128xf32>
    %1 = arith.mulf %0, %0 : vector<4x128xf32>
    %c0_1 = arith.constant 0 : index
    %c0_2 = arith.constant 0 : index
    %2 = vector.load %arg3[%c0_1, %c0_2] : memref<128x128xf32, #tpu.memory_space<vmem>>, vector<128x128xf32>
    %cst = arith.constant dense<0.000000e+00> : vector<4x128xf32>
    %3 = tpu.matmul %1, %2, %cst {dimension_numbers = #tpu.dot_dimension_numbers<[1], [0], [0], [1], [0, 0, 1, 1], [], []>} : vector<4x128xf32>, vector<128x128xf32>, vector<4x128xf32> -> vector<4x128xf32>
    %cst_3 = arith.constant 9.99999993E-9 : f32
    %4 = vector.broadcast %cst_3 : f32 to vector<4x128xf32>
    %5 = arith.addf %3, %4 : vector<4x128xf32>
    %6 = math.rsqrt %5 : vector<4x128xf32>
    %c0_4 = arith.constant 0 : index
    %c0_5 = arith.constant 0 : index
    %7 = vector.load %arg2[%c0_4, %c0_5] : memref<1x128xf32, #tpu.memory_space<vmem>>, vector<1x128xf32>
    %8 = vector.broadcast %7 : vector<1x128xf32> to vector<4x128xf32>
    %9 = arith.mulf %6, %8 : vector<4x128xf32>
    %10 = arith.mulf %0, %9 : vector<4x128xf32>
    %c0_6 = arith.constant 0 : index
    %c0_7 = arith.constant 0 : index
    %11 = vector.load %arg4[%c0_6, %c0_7] : memref<4x128xf32, #tpu.memory_space<vmem>>, vector<4x128xf32>
    tpu.vector_store %arg4[%c0_6, %c0_7], %10 {strides = array<i32>} : memref<4x128xf32, #tpu.memory_space<vmem>>, vector<4x128xf32>,
    return
  }
  func.func @transform_0(%arg0: i32) -> (i32, i32) {
    %c0_i32 = arith.constant 0 : i32
    %c0_i32_0 = arith.constant 0 : i32
    return %arg0, %c0_i32 : i32, i32
  }
  func.func @transform_1(%arg0: i32) -> (i32, i32) {
    %c0_i32 = arith.constant 0 : i32
    %c0_i32_0 = arith.constant 0 : i32
    %c0_i32_1 = arith.constant 0 : i32
    return %c0_i32, %c0_i32_0 : i32, i32
  }
  func.func @transform_2(%arg0: i32) -> (i32, i32) {
    %c0_i32 = arith.constant 0 : i32
    %c0_i32_0 = arith.constant 0 : i32
    %c0_i32_1 = arith.constant 0 : i32
    return %c0_i32, %c0_i32_0 : i32, i32
  }
  func.func @transform_3(%arg0: i32) -> (i32, i32) {
    %c0_i32 = arith.constant 0 : i32
    %c0_i32_0 = arith.constant 0 : i32
    return %arg0, %c0_i32 : i32, i32
  }
}

</mosaic_0001>

<llo_original>
// kernel: tpu_custom_call.1
$region0: #{tpu_custom_call.1}
  #allocation0 [shape = 'u32[]', space=smem, size = 0x4, offset = 0x4, fixed_abs, tag = 'smem constant byte address 0x4 - core index']
  #allocation1 [shape = 'u32[72,128]{1,0:T(1,128)}', space=vmem, size = 0x9000, scoped, tag = 'internal scratch']
  %s0 = inlined_call_operand.hbm [shape: f32[4,128], index: 0, kind: input, shape index: {}]
  %s1 = inlined_call_operand.hbm [shape: f32[1,128], index: 1, kind: input, shape index: {}]
  %s2 = inlined_call_operand.hbm [shape: f32[128,128], index: 2, kind: input, shape index: {}]
  %s3 = inlined_call_operand.hbm [shape: f32[4,128], index: 3, kind: output, shape index: {}]
  %s4 = sld [smem:[#allocation0]]
  $region34: #{tpu_custom_call.1} parent=0
    _
  %s6 = ssub.s32 1, %s4
  %s7 = scalar_select 0, %s6, %s4
  $region1: #{tpu_custom_call.1} parent=0
    #allocation2 [shape = 'u8[2048]{0}', space=vmem, size = 0x800, scoped, tag = 'input window, operand 0, single buffered']
    #allocation3 [shape = 's32[1]{0}', space=sflag, size = 0x4, scoped, tag = 'scoped memory for tpu_custom_call.1']
    #allocation4 [shape = 's32[1]{0}', space=sflag, size = 0x4, scoped, tag = 'scoped memory for tpu_custom_call.1']
    #allocation5 [shape = 'u8[512]{0}', space=vmem, size = 0x400, scoped, tag = 'input window, operand 1, single buffered']
    #allocation6 [shape = 's32[1]{0}', space=sflag, size = 0x4, scoped, tag = 'scoped memory for tpu_custom_call.1']
    #allocation7 [shape = 'u8[65536]{0}', space=vmem, size = 0x10000, scoped, tag = 'input window, operand 2, single buffered']
    #allocation8 [shape = 'u8[2048]{0}', space=vmem, size = 0x800, scoped, tag = 'output window, operand 0, single buffered']
    %8 = vsyncpa [#allocation3], 0
    %9 = vsyncpa [#allocation6], 0
    %10 = vsyncpa [#allocation4], 0
    // Predicated region
    $region2: #{tpu_custom_call.1} parent=1 // pred_check
      _
    $region3: #{tpu_custom_call.1} parent=1 // pred_check_branch
      %12 = sbr.rel (0) target = $region5
    $region4: #{tpu_custom_call.1} parent=1 // pred_region
      %14 = vsyncadd [#allocation3], 0
      %s16 = sshll.u32 %s0, 4
      %s17 = int_to_ptr.hbm [resolvable:$true] %s16
      %s18 = sshll.u32 [#allocation2], 4
      %s19 = int_to_ptr.vmem [resolvable:$true] %s18
      %21 = dma.hbm_to_vmem [thread:$0]  %s17, 64, %s19, [#allocation3]
    $region5: #{tpu_custom_call.1} parent=1 // pred_fallthru
      _
    // Predicated region
    $region6: #{tpu_custom_call.1} parent=1 // pred_check
      _
    $region7: #{tpu_custom_call.1} parent=1 // pred_check_branch
      %23 = sbr.rel (0) target = $region9
    $region8: #{tpu_custom_call.1} parent=1 // pred_region
      %25 = vsyncadd [#allocation6], 0
      %s27 = sshll.u32 %s1, 4
      %s28 = int_to_ptr.hbm [resolvable:$true] %s27
      %s29 = sshll.u32 [#allocation5], 4
      %s30 = int_to_ptr.vmem [resolvable:$true] %s29
      %32 = dma.hbm_to_vmem [thread:$0]  %s28, 16, %s30, [#allocation6]
    $region9: #{tpu_custom_call.1} parent=1 // pred_fallthru
      _
    // Predicated region
    $region10: #{tpu_custom_call.1} parent=1 // pred_check
      _
    $region11: #{tpu_custom_call.1} parent=1 // pred_check_branch
      %34 = sbr.rel (0) target = $region13
    $region12: #{tpu_custom_call.1} parent=1 // pred_region
      %36 = vsyncadd [#allocation6], 0
      %s37 = sshll.u32 %s2, 4
      %s38 = int_to_ptr.hbm [resolvable:$true] %s37
      %s39 = sshll.u32 [#allocation7], 4
      %s40 = int_to_ptr.vmem [resolvable:$true] %s39
      %45 = dma.hbm_to_vmem [thread:$0]  %s38, 2048, %s40, [#allocation6], 128, 128, 8
    $region13: #{tpu_custom_call.1} parent=1 // pred_fallthru
      _
    // Predicated region
    $region14: #{tpu_custom_call.1} parent=1 // pred_check
      _
    $region15: #{tpu_custom_call.1} parent=1 // pred_check_branch
      %47 = sbr.rel (0) target = $region17
    $region16: #{tpu_custom_call.1} parent=1 // pred_region
      %49 = dma.done [#allocation3], 64
    $region17: #{tpu_custom_call.1} parent=1 // pred_fallthru
      _
    // Predicated region
    $region18: #{tpu_custom_call.1} parent=1 // pred_check
      _
    $region19: #{tpu_custom_call.1} parent=1 // pred_check_branch
      %51 = sbr.rel (0) target = $region21
    $region20: #{tpu_custom_call.1} parent=1 // pred_region
      %53 = dma.done [#allocation6], 16
    $region21: #{tpu_custom_call.1} parent=1 // pred_fallthru
      _
    // Predicated region
    $region22: #{tpu_custom_call.1} parent=1 // pred_check
      _
    $region23: #{tpu_custom_call.1} parent=1 // pred_check_branch
      %55 = sbr.rel (0) target = $region25
    $region24: #{tpu_custom_call.1} parent=1 // pred_region
      %57 = dma.done [#allocation6], 2048
    $region25: #{tpu_custom_call.1} parent=1 // pred_fallthru
      _
    %v58 = vld [vmem:[#allocation2] sm:$0xf]
    %v59 = vmul.f32 %v58, %v58
    %v60 = vld [vmem:[#allocation7] sm:$0xff]
    %v61 = vld [vmem:[#allocation7 + $0x8] sm:$0xff]
    %v62 = vld [vmem:[#allocation7 + $0x10] sm:$0xff]
    %v63 = vld [vmem:[#allocation7 + $0x18] sm:$0xff]
    %v64 = vld [vmem:[#allocation7 + $0x20] sm:$0xff]
    %v65 = vld [vmem:[#allocation7 + $0x28] sm:$0xff]
    %v66 = vld [vmem:[#allocation7 + $0x30] sm:$0xff]
    %v67 = vld [vmem:[#allocation7 + $0x38] sm:$0xff]
    %v68 = vld [vmem:[#allocation7 + $0x40] sm:$0xff]
    %v69 = vld [vmem:[#allocation7 + $0x48] sm:$0xff]
    %v70 = vld [vmem:[#allocation7 + $0x50] sm:$0xff]
    %v71 = vld [vmem:[#allocation7 + $0x58] sm:$0xff]
    %v72 = vld [vmem:[#allocation7 + $0x60] sm:$0xff]
    %v73 = vld [vmem:[#allocation7 + $0x68] sm:$0xff]
    %v74 = vld [vmem:[#allocation7 + $0x70] sm:$0xff]
    %v75 = vld [vmem:[#allocation7 + $0x78] sm:$0xff]
    %76 = vmatpush.msra.mxu0 %v75
    %77 = vmatpush.msra.mxu0 %v74
    %78 = vmatpush.msra.mxu0 %v73
    %79 = vmatpush.msra.mxu0 %v72
    %80 = vmatpush.msra.mxu0 %v71
    %81 = vmatpush.msra.mxu0 %v70
    %82 = vmatpush.msra.mxu0 %v69
    %83 = vmatpush.msra.mxu0 %v68
    %84 = vmatpush.msra.mxu0 %v67
    %85 = vmatpush.msra.mxu0 %v66
    %86 = vmatpush.msra.mxu0 %v65
    %87 = vmatpush.msra.mxu0 %v64
    %88 = vmatpush.msra.mxu0 %v63
    %89 = vmatpush.msra.mxu0 %v62
    %90 = vmatpush.msra.mxu0 %v61
    %91 = vmatpush.msra.mxu0 %v60
    %92 = vmatmul.f32.gmra.mxu0 %v59
    %v93 = vpop.f32.mrf.mxu0
    %v94 = vadd.f32 1e-08, %v93
    %95 = vdwg.mxu0
    %v96 = vrsqrt.pop %v94
    %v97 = vmul.f32 %v96, %v94
    %v98 = vmul.f32 %v97, %v96
    %v99 = vmul.f32 0.5, %v98
    %v100 = vsub.f32 1.5, %v99
    %v101 = vmul.f32 %v96, %v100
    %vm102 = vweird.f32 %v94
    %vm103 = vweird.f32 %v96
    %vm104 = vmor %vm102, %vm103
    %v105 = vsel %vm104, %v96, %v101
    %v106 = vld [vmem:[#allocation5] sm:$0x1]
    %v108 = vperm.slane %v106, 0
    %v110 = vmul.f32 %v105, %v108
    %v111 = vmul.f32 %v58, %v110
    %112 = vst [vmem:[#allocation8] sm:$0xf] %v111
    // Predicated region
    $region26: #{tpu_custom_call.1} parent=1 // pred_check
      _
    $region27: #{tpu_custom_call.1} parent=1 // pred_check_branch
      %114 = sbr.rel (0) target = $region29
    $region28: #{tpu_custom_call.1} parent=1 // pred_region
      %116 = vsyncadd [#allocation4], 0
      %s118 = sshll.u32 [#allocation8], 4
      %s119 = int_to_ptr.vmem [resolvable:$true] %s118
      %s120 = sshll.u32 %s3, 4
      %s121 = int_to_ptr.hbm [resolvable:$true] %s120
      %123 = dma.vmem_to_hbm [thread:$0]  %s119, 64, %s121, [#allocation4]
    $region29: #{tpu_custom_call.1} parent=1 // pred_fallthru
      _
    // Predicated region
    $region30: #{tpu_custom_call.1} parent=1 // pred_check
      _
    $region31: #{tpu_custom_call.1} parent=1 // pred_check_branch
      %125 = sbr.rel (0) target = $region33
    $region32: #{tpu_custom_call.1} parent=1 // pred_region
      %127 = dma.done [#allocation4], 64
    $region33: #{tpu_custom_call.1} parent=1 // pred_fallthru
      _
    %128 = vsyncpa [#allocation3], 1
    %129 = vsyncpa [#allocation6], 1
    %130 = vsyncpa [#allocation4], 1

</llo_original>
